<compile_context>
chip_gen: v5e
topology: v5e:2x2
jax: 0.10.0
libtpu: 0.0.40
codegen_flags: <defaults>
</compile_context>

<pallas_src>
import jax
import jax.numpy as jnp
from jax import lax
from jax.experimental import pallas as pl
from jax.experimental.pallas import tpu as pltpu

EPS = 1e-8  # PyTorch F.cosine_similarity default eps


def _round_up(n, m):
    return ((n + m - 1) // m) * m


def cosine_sim_kernel(w_ref, x_ref, o_ref):
    # w_ref: (N, K) = (5, 7) pre-normalized weight rows (resident across steps)
    # x_ref: (K, TB) = (7, TB) lane-dense batch tile
    # o_ref: (N, TB) = (5, TB) lane-dense output tile
    x = x_ref[...]                    # (K, TB)
    w = w_ref[...]                    # (N, K)

    # dots[n, b] = sum_k w[n, k] * x[k, b]
    # VPU broadcast-FMA (outer-product accumulation); K=7, N=5 would fill
    # <0.1% of the MXU, so keep it entirely on the VPU.
    acc = w[:, 0:1] * x[0:1, :]       # (N,1) * (1,TB) -> (N, TB)
    for k in range(1, x.shape[0]):    # static unroll over K-1 = 6 terms
        acc = acc + w[:, k:k + 1] * x[k:k + 1, :]

    # Clamp-normalize by the input norm (weight rows are already normalized in
    # the wrapper):  max(||x||, eps) == sqrt(max(||x||^2, eps^2)) for ||x||^2>=0.
    # lax.rsqrt uses the EUP approximation (~1-2 ulp), well within tolerance.
    inv = lax.rsqrt(
        jnp.maximum(jnp.sum(x * x, axis=0, keepdims=True), EPS * EPS)
    )                                 # (1, TB)

    o_ref[...] = (acc * inv).astype(o_ref.dtype)


def cosine_similarity_pallas(x, weight, *, tb=32 * 1024):
    """x: (B, K) f32, weight: (N, K) f32 -> (B, N) f32 cosine similarities."""
    B, K = x.shape
    N, Kw = weight.shape
    assert K == Kw

    # ---- one-time weight prep, hoisted out of the grid loop (5x7, negligible):
    # clamp-normalize each weight row exactly (sqrt + divide).
    w_norm = jnp.sqrt(jnp.sum(weight * weight, axis=-1, keepdims=True))
    w_hat = weight / jnp.maximum(w_norm, EPS)            # (N, K)

    # ---- lane-dense layout: batch goes on the lane axis.
    # This is wrapper-side layout plumbing; upstream code that already stores x
    # as (K, B) (or consumes (N, B)) can bypass these transposes entirely.
    x_t = x.T                                            # (K, B)

    # ---- batch (lane) tile selection.
    if B <= 256:
        TB = B                                           # single block; block dims == full dims
    else:
        # >= 2 grid steps so both v7x TensorCores get work; lane tile a
        # multiple of 128.  Sweep `tb` (32K-128K) + vmem_limit_bytes if needed.
        TB = min(tb, _round_up(pl.cdiv(B, 2), 128))
    grid = (pl.cdiv(B, TB),)

    out_t = pl.pallas_call(
        cosine_sim_kernel,
        out_shape=jax.ShapeDtypeStruct((N, B), jnp.float32),
        grid=grid,
        in_specs=[
            pl.BlockSpec((N, K), lambda i: (0, 0)),      # normalized weights, resident
            pl.BlockSpec((K, TB), lambda i: (0, i)),     # lane-dense batch tile
        ],
        out_specs=pl.BlockSpec((N, TB), lambda i: (0, i)),  # lane-dense output tile
        compiler_params=pltpu.CompilerParams(
            dimension_semantics=("parallel",),           # batch steps are independent
        ),
    )(w_hat, x_t)

    return out_t.T                                       # (B, N)


class A:
    """JAX port of the PyTorch module: rows of a bias-free Linear(7, 5) weight
    compared against the input rows with F.cosine_similarity(dim=-1)."""

    def __init__(self, key):
        in_features, out_features = 7, 5
        bound = 1.0 / jnp.sqrt(jnp.float32(in_features))
        self.weight = jax.random.uniform(
            key, (out_features, in_features), jnp.float32, -bound, bound
        )

    def __call__(self, x):
        # torch.cat([w[:3].detach(), w[3:]], 0) is numerically the identity in
        # the forward pass (detach only affects autograd) -> use w directly.
        return cosine_similarity_pallas(x, self.weight)


if __name__ == "__main__":
    key = jax.random.PRNGKey(0)
    k_w, k_x, k_x2 = jax.random.split(key, 3)

    model = A(k_w)

    def reference(x, w):
        # Plain-JAX reference with PyTorch F.cosine_similarity semantics.
        dots = x @ w.T
        xn = jnp.maximum(jnp.linalg.norm(x, axis=-1, keepdims=True), EPS)
        wn = jnp.maximum(jnp.linalg.norm(w, axis=-1, keepdims=True), EPS)
        return dots / (xn * wn.T)

    # Small single-block case.
    B = 8
    x = jax.random.normal(k_x, (B, 7), dtype=jnp.float32)
    out = jax.block_until_ready(model(x))
    assert out.shape == (B, 5)
    assert jnp.allclose(out, reference(x, model.weight), atol=1e-5), "mismatch (B=8)"

    # Multi-block case: 2 grid steps with a partial last block (exercises
    # lane-axis masking of the final tile).
    B2 = 300
    x2 = jax.random.normal(k_x2, (B2, 7), dtype=jnp.float32)
    out2 = jax.block_until_ready(model(x2))
    assert out2.shape == (B2, 5)
    assert jnp.allclose(out2, reference(x2, model.weight), atol=1e-5), "mismatch (B=300)"

    print("KERNEL_OK")
</pallas_src>

<mosaic_0001>
module attributes {stable_mosaic.version = 11 : i64} {
  func.func @cosine_sim_kernel(%arg0: i32, %arg1: memref<5x7xf32, #tpu.memory_space<vmem>>, %arg2: memref<7x8xf32, #tpu.memory_space<vmem>>, %arg3: memref<5x8xf32, #tpu.memory_space<vmem>>) attributes {dimension_semantics = [#tpu.dimension_semantics<parallel>], iteration_bounds = array<i64: 1>, scalar_prefetch = 0 : i64, scratch_operands = 0 : i64, tpu.core_type = #tpu.core_type<tc>, window_params = [{pipeline_mode = #tpu.pipeline_mode<synchronous>, transform_indices = @transform_0, window_bounds = array<i64: 5, 7>}, {transform_indices = @transform_1, window_bounds = array<i64: 7, 8>}, {transform_indices = @transform_2, window_bounds = array<i64: 5, 8>}]} {
    %c0 = arith.constant 0 : index
    %c0_0 = arith.constant 0 : index
    %0 = vector.load %arg2[%c0, %c0_0] : memref<7x8xf32, #tpu.memory_space<vmem>>, vector<7x8xf32>
    %c0_1 = arith.constant 0 : index
    %c0_2 = arith.constant 0 : index
    %1 = vector.load %arg1[%c0_1, %c0_2] : memref<5x7xf32, #tpu.memory_space<vmem>>, vector<5x7xf32>
    %2 = vector.extract_strided_slice %1 {offsets = [0, 0], sizes = [5, 1], strides = [1, 1]} : vector<5x7xf32> to vector<5x1xf32>
    %3 = vector.extract_strided_slice %0 {offsets = [0, 0], sizes = [1, 8], strides = [1, 1]} : vector<7x8xf32> to vector<1x8xf32>
    %4 = vector.broadcast %2 : vector<5x1xf32> to vector<5x8xf32>
    %5 = vector.broadcast %3 : vector<1x8xf32> to vector<5x8xf32>
    %6 = arith.mulf %4, %5 : vector<5x8xf32>
    %7 = vector.extract_strided_slice %1 {offsets = [0, 1], sizes = [5, 1], strides = [1, 1]} : vector<5x7xf32> to vector<5x1xf32>
    %8 = vector.extract_strided_slice %0 {offsets = [1, 0], sizes = [1, 8], strides = [1, 1]} : vector<7x8xf32> to vector<1x8xf32>
    %9 = vector.broadcast %7 : vector<5x1xf32> to vector<5x8xf32>
    %10 = vector.broadcast %8 : vector<1x8xf32> to vector<5x8xf32>
    %11 = arith.mulf %9, %10 : vector<5x8xf32>
    %12 = arith.addf %6, %11 : vector<5x8xf32>
    %13 = vector.extract_strided_slice %1 {offsets = [0, 2], sizes = [5, 1], strides = [1, 1]} : vector<5x7xf32> to vector<5x1xf32>
    %14 = vector.extract_strided_slice %0 {offsets = [2, 0], sizes = [1, 8], strides = [1, 1]} : vector<7x8xf32> to vector<1x8xf32>
    %15 = vector.broadcast %13 : vector<5x1xf32> to vector<5x8xf32>
    %16 = vector.broadcast %14 : vector<1x8xf32> to vector<5x8xf32>
    %17 = arith.mulf %15, %16 : vector<5x8xf32>
    %18 = arith.addf %12, %17 : vector<5x8xf32>
    %19 = vector.extract_strided_slice %1 {offsets = [0, 3], sizes = [5, 1], strides = [1, 1]} : vector<5x7xf32> to vector<5x1xf32>
    %20 = vector.extract_strided_slice %0 {offsets = [3, 0], sizes = [1, 8], strides = [1, 1]} : vector<7x8xf32> to vector<1x8xf32>
    %21 = vector.broadcast %19 : vector<5x1xf32> to vector<5x8xf32>
    %22 = vector.broadcast %20 : vector<1x8xf32> to vector<5x8xf32>
    %23 = arith.mulf %21, %22 : vector<5x8xf32>
    %24 = arith.addf %18, %23 : vector<5x8xf32>
    %25 = vector.extract_strided_slice %1 {offsets = [0, 4], sizes = [5, 1], strides = [1, 1]} : vector<5x7xf32> to vector<5x1xf32>
    %26 = vector.extract_strided_slice %0 {offsets = [4, 0], sizes = [1, 8], strides = [1, 1]} : vector<7x8xf32> to vector<1x8xf32>
    %27 = vector.broadcast %25 : vector<5x1xf32> to vector<5x8xf32>
    %28 = vector.broadcast %26 : vector<1x8xf32> to vector<5x8xf32>
    %29 = arith.mulf %27, %28 : vector<5x8xf32>
    %30 = arith.addf %24, %29 : vector<5x8xf32>
    %31 = vector.extract_strided_slice %1 {offsets = [0, 5], sizes = [5, 1], strides = [1, 1]} : vector<5x7xf32> to vector<5x1xf32>
    %32 = vector.extract_strided_slice %0 {offsets = [5, 0], sizes = [1, 8], strides = [1, 1]} : vector<7x8xf32> to vector<1x8xf32>
    %33 = vector.broadcast %31 : vector<5x1xf32> to vector<5x8xf32>
    %34 = vector.broadcast %32 : vector<1x8xf32> to vector<5x8xf32>
    %35 = arith.mulf %33, %34 : vector<5x8xf32>
    %36 = arith.addf %30, %35 : vector<5x8xf32>
    %37 = vector.extract_strided_slice %1 {offsets = [0, 6], sizes = [5, 1], strides = [1, 1]} : vector<5x7xf32> to vector<5x1xf32>
    %38 = vector.extract_strided_slice %0 {offsets = [6, 0], sizes = [1, 8], strides = [1, 1]} : vector<7x8xf32> to vector<1x8xf32>
    %39 = vector.broadcast %37 : vector<5x1xf32> to vector<5x8xf32>
    %40 = vector.broadcast %38 : vector<1x8xf32> to vector<5x8xf32>
    %41 = arith.mulf %39, %40 : vector<5x8xf32>
    %42 = arith.addf %36, %41 : vector<5x8xf32>
    %43 = arith.mulf %0, %0 : vector<7x8xf32>
    %cst = arith.constant dense<0.000000e+00> : vector<8xf32>
    %44 = vector.multi_reduction <add>, %43, %cst [0] : vector<7x8xf32> to vector<8xf32>
    %45 = vector.shape_cast %44 : vector<8xf32> to vector<1x8xf32>
    %cst_3 = arith.constant 1.000000e-16 : f32
    %46 = vector.broadcast %cst_3 : f32 to vector<1x8xf32>
    %47 = arith.maximumf %45, %46 : vector<1x8xf32>
    %48 = math.rsqrt %47 : vector<1x8xf32>
    %49 = vector.broadcast %48 : vector<1x8xf32> to vector<5x8xf32>
    %50 = arith.mulf %42, %49 : vector<5x8xf32>
    %c0_4 = arith.constant 0 : index
    %c0_5 = arith.constant 0 : index
    %51 = vector.load %arg3[%c0_4, %c0_5] : memref<5x8xf32, #tpu.memory_space<vmem>>, vector<5x8xf32>
    tpu.vector_store %arg3[%c0_4, %c0_5], %50 {strides = array<i32>} : memref<5x8xf32, #tpu.memory_space<vmem>>, vector<5x8xf32>,
    return
  }
  func.func @transform_0(%arg0: i32) -> (i32, i32) {
    %c0_i32 = arith.constant 0 : i32
    %c0_i32_0 = arith.constant 0 : i32
    %c0_i32_1 = arith.constant 0 : i32
    return %c0_i32, %c0_i32_0 : i32, i32
  }
  func.func @transform_1(%arg0: i32) -> (i32, i32) {
    %c0_i32 = arith.constant 0 : i32
    %c0_i32_0 = arith.constant 0 : i32
    return %c0_i32, %arg0 : i32, i32
  }
  func.func @transform_2(%arg0: i32) -> (i32, i32) {
    %c0_i32 = arith.constant 0 : i32
    %c0_i32_0 = arith.constant 0 : i32
    return %c0_i32, %arg0 : i32, i32
  }
}

</mosaic_0001>

<llo_original>
// kernel: tpu_custom_call.1
$region0: #{tpu_custom_call.1}
  #allocation0 [shape = 'u32[]', space=smem, size = 0x4, offset = 0x4, fixed_abs, tag = 'smem constant byte address 0x4 - core index']
  #allocation1 [shape = 'u32[72,128]{1,0:T(1,128)}', space=vmem, size = 0x9000, scoped, tag = 'internal scratch']
  %s0 = inlined_call_operand.hbm [shape: f32[5,7], index: 0, kind: input, shape index: {}]
  %s1 = inlined_call_operand.hbm [shape: f32[7,8], index: 1, kind: input, shape index: {}]
  %s2 = inlined_call_operand.hbm [shape: f32[5,8], index: 2, kind: output, shape index: {}]
  %s3 = sld [smem:[#allocation0]]
  $region26: #{tpu_custom_call.1} parent=0
    _
  %s5 = ssub.s32 1, %s3
  %s6 = scalar_select 0, %s5, %s3
  $region1: #{tpu_custom_call.1} parent=0
    #allocation2 [shape = 'u8[4096]{0}', space=vmem, size = 0x1000, scoped, tag = 'input window, operand 0, single buffered']
    #allocation3 [shape = 's32[1]{0}', space=sflag, size = 0x4, scoped, tag = 'scoped memory for tpu_custom_call.1']
    #allocation4 [shape = 's32[1]{0}', space=sflag, size = 0x4, scoped, tag = 'scoped memory for tpu_custom_call.1']
    #allocation5 [shape = 'u8[4096]{0}', space=vmem, size = 0x1000, scoped, tag = 'input window, operand 1, single buffered']
    #allocation6 [shape = 's32[1]{0}', space=sflag, size = 0x4, scoped, tag = 'scoped memory for tpu_custom_call.1']
    #allocation7 [shape = 'u8[4096]{0}', space=vmem, size = 0x1000, scoped, tag = 'output window, operand 0, single buffered']
    %7 = vsyncpa [#allocation3], 0
    %8 = vsyncpa [#allocation6], 0
    %9 = vsyncpa [#allocation4], 0
    // Predicated region
    $region2: #{tpu_custom_call.1} parent=1 // pred_check
      _
    $region3: #{tpu_custom_call.1} parent=1 // pred_check_branch
      %11 = sbr.rel (0) target = $region5
    $region4: #{tpu_custom_call.1} parent=1 // pred_region
      %13 = vsyncadd [#allocation3], 0
      %s15 = sshll.u32 %s0, 4
      %s16 = int_to_ptr.hbm [resolvable:$true] %s15
      %s17 = sshll.u32 [#allocation2], 4
      %s18 = int_to_ptr.vmem [resolvable:$true] %s17
      %20 = dma.hbm_to_vmem [thread:$0]  %s16, 128, %s18, [#allocation3]
    $region5: #{tpu_custom_call.1} parent=1 // pred_fallthru
      _
    // Predicated region
    $region6: #{tpu_custom_call.1} parent=1 // pred_check
      _
    $region7: #{tpu_custom_call.1} parent=1 // pred_check_branch
      %22 = sbr.rel (0) target = $region9
    $region8: #{tpu_custom_call.1} parent=1 // pred_region
      %24 = vsyncadd [#allocation6], 0
      %s26 = sshll.u32 %s1, 4
      %s27 = int_to_ptr.hbm [resolvable:$true] %s26
      %s28 = sshll.u32 [#allocation5], 4
      %s29 = int_to_ptr.vmem [resolvable:$true] %s28
      %31 = dma.hbm_to_vmem [thread:$0]  %s27, 128, %s29, [#allocation6]
    $region9: #{tpu_custom_call.1} parent=1 // pred_fallthru
      _
    // Predicated region
    $region10: #{tpu_custom_call.1} parent=1 // pred_check
      _
    $region11: #{tpu_custom_call.1} parent=1 // pred_check_branch
      %33 = sbr.rel (0) target = $region13
    $region12: #{tpu_custom_call.1} parent=1 // pred_region
      %35 = dma.done [#allocation3], 128
    $region13: #{tpu_custom_call.1} parent=1 // pred_fallthru
      _
    // Predicated region
    $region14: #{tpu_custom_call.1} parent=1 // pred_check
      _
    $region15: #{tpu_custom_call.1} parent=1 // pred_check_branch
      %37 = sbr.rel (0) target = $region17
    $region16: #{tpu_custom_call.1} parent=1 // pred_region
      %39 = dma.done [#allocation6], 128
    $region17: #{tpu_custom_call.1} parent=1 // pred_fallthru
      _
    %v40 = vld [vmem:[#allocation5] sm:$0x7f]
    %v41 = vld [vmem:[#allocation2] sm:$0x1f]
    %43 = vset.pattern.permute.xlu0 0
    %44 = vperm.xlu0 %43, %v41
    %v45 = vpop.permute.xlu0 %44
    %v47 = vperm.slane %v40, 0
    %v48 = vmul.f32 %v45, %v47
    %49 = vset.pattern.permute.xlu0 1
    %50 = vperm.xlu0 %49, %v41
    %v51 = vpop.permute.xlu0 %50
    %v53 = vperm.slane %v40, 1
    %v54 = vmul.f32 %v51, %v53
    %v55 = vadd.f32 %v48, %v54
    %56 = vset.pattern.permute.xlu0 2
    %57 = vperm.xlu0 %56, %v41
    %v58 = vpop.permute.xlu0 %57
    %v60 = vperm.slane %v40, 2
    %v61 = vmul.f32 %v58, %v60
    %v62 = vadd.f32 %v55, %v61
    %63 = vset.pattern.permute.xlu0 3
    %64 = vperm.xlu0 %63, %v41
    %v65 = vpop.permute.xlu0 %64
    %v67 = vperm.slane %v40, 3
    %v68 = vmul.f32 %v65, %v67
    %v69 = vadd.f32 %v62, %v68
    %70 = vset.pattern.permute.xlu0 4
    %71 = vperm.xlu0 %70, %v41
    %v72 = vpop.permute.xlu0 %71
    %v74 = vperm.slane %v40, 4
    %v75 = vmul.f32 %v72, %v74
    %v76 = vadd.f32 %v69, %v75
    %77 = vset.pattern.permute.xlu0 5
    %78 = vperm.xlu0 %77, %v41
    %v79 = vpop.permute.xlu0 %78
    %v81 = vperm.slane %v40, 5
    %v82 = vmul.f32 %v79, %v81
    %v83 = vadd.f32 %v76, %v82
    %84 = vset.pattern.permute.xlu0 6
    %85 = vperm.xlu0 %84, %v41
    %v86 = vpop.permute.xlu0 %85
    %v88 = vperm.slane %v40, 6
    %v89 = vmul.f32 %v86, %v88
    %v90 = vadd.f32 %v83, %v89
    %v91 = vmul.f32 %v40, %v40
    %vm92 = vcmask 63488
    %v93 = vsel %vm92, %v91, 0.0
    %v94 = vrot.slane %v93, 4
    %v95 = vadd.f32 %v93, %v94
    %v96 = vrot.slane %v95, 2
    %v97 = vadd.f32 %v95, %v96
    %v98 = vrot.slane %v97, 1
    %v99 = vadd.f32 %v97, %v98
    %v100 = vmax.f32 %v99, 1e-16
    %v101 = vrsqrt.pop %v100
    %v102 = vmul.f32 %v101, %v100
    %v103 = vmul.f32 %v102, %v101
    %v104 = vmul.f32 0.5, %v103
    %v105 = vsub.f32 1.5, %v104
    %v106 = vmul.f32 %v101, %v105
    %vm107 = vweird.f32 %v100
    %vm108 = vweird.f32 %v101
    %vm109 = vmor %vm107, %vm108
    %v110 = vsel %vm109, %v101, %v106
    %v111 = vmul.f32 %v90, %v110
    %vm112 = vcmask 61440
    %113 = vst.msk [vmem:[#allocation7] sm:$0x1f] %vm112, %v111
    // Predicated region
    $region18: #{tpu_custom_call.1} parent=1 // pred_check
      _
    $region19: #{tpu_custom_call.1} parent=1 // pred_check_branch
      %115 = sbr.rel (0) target = $region21
    $region20: #{tpu_custom_call.1} parent=1 // pred_region
      %117 = vsyncadd [#allocation4], 0
      %s119 = sshll.u32 [#allocation7], 4
      %s120 = int_to_ptr.vmem [resolvable:$true] %s119
      %s121 = sshll.u32 %s2, 4
      %s122 = int_to_ptr.hbm [resolvable:$true] %s121
      %124 = dma.vmem_to_hbm [thread:$0]  %s120, 128, %s122, [#allocation4]
    $region21: #{tpu_custom_call.1} parent=1 // pred_fallthru
      _
    // Predicated region
    $region22: #{tpu_custom_call.1} parent=1 // pred_check
      _
    $region23: #{tpu_custom_call.1} parent=1 // pred_check_branch
      %126 = sbr.rel (0) target = $region25
    $region24: #{tpu_custom_call.1} parent=1 // pred_region
      %128 = dma.done [#allocation4], 128
    $region25: #{tpu_custom_call.1} parent=1 // pred_fallthru
      _
    %129 = vsyncpa [#allocation3], 1
    %130 = vsyncpa [#allocation6], 1
    %131 = vsyncpa [#allocation4], 1

</llo_original>
